<compile_context>
chip_gen: v7x
topology: tpu7x:2x2x1
jax: 0.10.0
libtpu: 0.0.40
codegen_flags: <defaults>
</compile_context>

<pallas_src>
import functools

import jax
import jax.numpy as jnp
import numpy as np
from jax.experimental import pallas as pl
from jax.experimental.pallas import tpu as pltpu

EPSILON = 1e-5


def _round_up(n, m):
    return ((n + m - 1) // m) * m


def _vmem_capacity_bytes():
    """Physical VMEM of the current generation; conservative fallback = v7x."""
    try:
        return int(pltpu.get_tpu_info().vmem_capacity_bytes)
    except Exception:
        return 64 << 20  # v7x per-TensorCore VMEM (smallest of v5e/v6e/v7x)


def _row_step(itemsize):
    """Sublane granularity: packed dtypes fill 16/32 sublanes per vreg."""
    if itemsize >= 4:
        return 8
    if itemsize == 2:
        return 16
    return 32


def _pick_seq_tile(B, T, Hp, itemsize, vmem_cap):
    """Sequence-tile rows: largest tile within the per-buffer VMEM budget,
    kept small enough that the parallel grid still has >= ~4 steps."""
    step = _row_step(itemsize)
    # Per-buffer budget: 4 pipeline buffers (in+out, double-buffered) plus f32
    # temporaries must fit comfortably; cap at 8 MiB per buffer.
    budget = min(8 << 20, vmem_cap // 16)
    rows = max(step, (budget // (Hp * itemsize)) // step * step)
    rows = min(rows, _round_up(T, step))
    # Keep at least ~4 grid steps so both TensorCores (v7x) get work.
    while B * (-(-T // rows)) < 4 and rows > step:
        rows = max(step, (rows // 2) // step * step)
    return rows, step


def _cln_kernel(x_ref, scale_ref, bias_ref, o_ref, *, inv_h):
    """One grid step: one (tT, Hp) sequence tile of one batch element.

    x_ref     : (tT, Hp) input tile (batch dim squeezed away)
    scale_ref : (B, Hp)  fully-resident speaker-conditioned scales
    bias_ref  : (B, Hp)  fully-resident speaker-conditioned biases
    o_ref     : (tT, Hp) output tile
    """
    b = pl.program_id(0)
    x = x_ref[...].astype(jnp.float32)                     # (tT, Hp)

    # One-pass statistics over the hidden dim.  Hp may be zero-padded beyond
    # the real H; zeros contribute nothing to either sum and we divide by the
    # real H (inv_h), so mean/var are exact.  The two cross-lane (XLU)
    # reductions are independent -> no serial dependency on the tile path.
    s1 = jnp.sum(x, axis=-1, keepdims=True)                # (tT, 1)
    s2 = jnp.sum(x * x, axis=-1, keepdims=True)            # (tT, 1)
    mean = s1 * inv_h
    var = jnp.maximum(s2 * inv_h - mean * mean, 0.0)
    inv = jax.lax.rsqrt(var + EPSILON)                     # EUP rsqrt

    # Speaker-conditioned affine modulation (per-batch row of resident block).
    scale = scale_ref[pl.ds(b, 1), :].astype(jnp.float32)  # (1, Hp)
    bias = bias_ref[pl.ds(b, 1), :].astype(jnp.float32)    # (1, Hp)

    o_ref[...] = ((x - mean) * (inv * scale) + bias).astype(o_ref.dtype)


def conditional_layer_norm(x, speaker_emb, w_scale, b_scale, w_bias, b_bias):
    """x: (B, T, H); speaker_emb: (B, E); w_*: (E, H) (transposed vs torch); b_*: (H,)."""
    B, T, H = x.shape
    itemsize = x.dtype.itemsize

    # Precompute speaker-conditioned scale / bias once, in plain JAX (f32).
    scale = (speaker_emb.astype(jnp.float32) @ w_scale.astype(jnp.float32)
             + b_scale.astype(jnp.float32)).reshape(B, H)
    bias = (speaker_emb.astype(jnp.float32) @ w_bias.astype(jnp.float32)
            + b_bias.astype(jnp.float32)).reshape(B, H)

    # ---- Lane-dense hidden dim + tile-aligned sequence dim (zero padding). ----
    Hp = _round_up(H, 128)
    vmem_cap = _vmem_capacity_bytes()
    tT, step = _pick_seq_tile(B, T, Hp, itemsize, vmem_cap)
    Tp = _round_up(T, tT)

    if Hp != H or Tp != T:
        x_p = jnp.pad(x, ((0, 0), (0, Tp - T), (0, Hp - H)))
    else:
        x_p = x
    if Hp != H:
        scale = jnp.pad(scale, ((0, 0), (0, Hp - H)))
        bias = jnp.pad(bias, ((0, 0), (0, Hp - H)))

    grid = (B, Tp // tT)

    # Explicit VMEM budget: above the scoped defaults (16 MiB v5e / 32 MiB
    # v6e+v7x) when large tiles demand it, well under physical capacity.
    tile_bytes = tT * Hp * itemsize
    vmem_limit = min(int(0.75 * vmem_cap),
                     max(32 << 20, 6 * tile_bytes + (4 << 20)))

    cost = pl.CostEstimate(
        flops=8 * B * Tp * Hp,
        transcendentals=B * Tp,
        bytes_accessed=2 * B * Tp * Hp * itemsize + 2 * B * Hp * 4,
    )

    out_p = pl.pallas_call(
        functools.partial(_cln_kernel, inv_h=1.0 / H),
        out_shape=jax.ShapeDtypeStruct((B, Tp, Hp), x.dtype),
        grid_spec=pltpu.PrefetchScalarGridSpec(
            num_scalar_prefetch=0,
            grid=grid,
            in_specs=[
                pl.BlockSpec((pl.Squeezed(), tT, Hp), lambda b, t: (b, t, 0)),  # x
                pl.BlockSpec((B, Hp), lambda b, t: (0, 0)),                     # scale (resident)
                pl.BlockSpec((B, Hp), lambda b, t: (0, 0)),                     # bias  (resident)
            ],
            out_specs=pl.BlockSpec((pl.Squeezed(), tT, Hp), lambda b, t: (b, t, 0)),
        ),
        compiler_params=pltpu.CompilerParams(
            dimension_semantics=("parallel", "parallel"),
            vmem_limit_bytes=vmem_limit,
        ),
        cost_estimate=cost,
    )(x_p, scale, bias)

    if Hp != H or Tp != T:
        out_p = out_p[:, :T, :H]
    return out_p


def reference(x, speaker_emb, w_scale, b_scale, w_bias, b_bias):
    x = x.astype(jnp.float32)
    mean = jnp.mean(x, axis=-1, keepdims=True)
    var = jnp.mean((x - mean) ** 2, axis=-1, keepdims=True)
    x_out = (x - mean) / jnp.sqrt(var + EPSILON)
    scale = speaker_emb @ w_scale + b_scale          # (B, H)
    bias = speaker_emb @ w_bias + b_bias             # (B, H)
    return x_out * scale[:, None, :] + bias[:, None, :]


if __name__ == "__main__":
    key = jax.random.PRNGKey(0)
    kx, ks, kw1, kw2, kb1, kb2 = jax.random.split(key, 6)

    # ---- Test 1: module's deterministic init (W=0, b_scale=1, b_bias=0) ----
    B, T, H, E = 2, 8, 32, 32   # batch, seq, hidden_size, speaker_embedding_dim
    x = jax.random.normal(kx, (B, T, H), dtype=jnp.float32)
    speaker_emb = jax.random.normal(ks, (B, E), dtype=jnp.float32)

    w_scale = jnp.zeros((E, H), dtype=jnp.float32)   # stored transposed: (E, H)
    b_scale = jnp.ones((H,), dtype=jnp.float32)
    w_bias = jnp.zeros((E, H), dtype=jnp.float32)
    b_bias = jnp.zeros((H,), dtype=jnp.float32)

    out = conditional_layer_norm(x, speaker_emb, w_scale, b_scale, w_bias, b_bias)
    out = jax.block_until_ready(out)
    ref = reference(x, speaker_emb, w_scale, b_scale, w_bias, b_bias)
    np.testing.assert_allclose(np.asarray(out), np.asarray(ref), rtol=1e-5, atol=1e-5)

    # ---- Test 2: random weights, lane-dense H, tiled sequence axis ----
    B2, T2, H2, E2 = 2, 64, 128, 32
    kx2, ks2 = jax.random.split(jax.random.PRNGKey(1))
    x2 = jax.random.normal(kx2, (B2, T2, H2), dtype=jnp.float32)
    spk2 = jax.random.normal(ks2, (B2, E2), dtype=jnp.float32)
    w_scale2 = 0.1 * jax.random.normal(kw1, (E2, H2), dtype=jnp.float32)
    b_scale2 = 1.0 + 0.1 * jax.random.normal(kb1, (H2,), dtype=jnp.float32)
    w_bias2 = 0.1 * jax.random.normal(kw2, (E2, H2), dtype=jnp.float32)
    b_bias2 = 0.1 * jax.random.normal(kb2, (H2,), dtype=jnp.float32)

    out2 = conditional_layer_norm(x2, spk2, w_scale2, b_scale2, w_bias2, b_bias2)
    out2 = jax.block_until_ready(out2)
    ref2 = reference(x2, spk2, w_scale2, b_scale2, w_bias2, b_bias2)
    np.testing.assert_allclose(np.asarray(out2), np.asarray(ref2), rtol=1e-5, atol=1e-5)

    # ---- Test 3: awkward T and H (exercises T-pad + H-pad + tail slicing) ----
    B3, T3, H3, E3 = 2, 13, 48, 32
    kx3, ks3 = jax.random.split(jax.random.PRNGKey(2))
    x3 = jax.random.normal(kx3, (B3, T3, H3), dtype=jnp.float32)
    spk3 = jax.random.normal(ks3, (B3, E3), dtype=jnp.float32)
    w_scale3 = 0.1 * jax.random.normal(kw1, (E3, H3), dtype=jnp.float32)
    b_scale3 = 1.0 + 0.1 * jax.random.normal(kb1, (H3,), dtype=jnp.float32)
    w_bias3 = 0.1 * jax.random.normal(kw2, (E3, H3), dtype=jnp.float32)
    b_bias3 = 0.1 * jax.random.normal(kb2, (H3,), dtype=jnp.float32)

    out3 = conditional_layer_norm(x3, spk3, w_scale3, b_scale3, w_bias3, b_bias3)
    out3 = jax.block_until_ready(out3)
    ref3 = reference(x3, spk3, w_scale3, b_scale3, w_bias3, b_bias3)
    np.testing.assert_allclose(np.asarray(out3), np.asarray(ref3), rtol=1e-5, atol=1e-5)

    print("KERNEL_OK")
</pallas_src>

<mosaic_0001>
module attributes {stable_mosaic.version = 11 : i64} {
  func.func @_cln_kernel(%arg0: i32, %arg1: i32, %arg2: memref<1x8x128xf32, #tpu.memory_space<vmem>>, %arg3: memref<2x128xf32, #tpu.memory_space<vmem>>, %arg4: memref<2x128xf32, #tpu.memory_space<vmem>>, %arg5: memref<1x8x128xf32, #tpu.memory_space<vmem>>) attributes {dimension_semantics = [#tpu.dimension_semantics<parallel>, #tpu.dimension_semantics<parallel>], iteration_bounds = array<i64: 2, 1>, scalar_prefetch = 0 : i64, scratch_operands = 0 : i64, tpu.core_type = #tpu.core_type<tc>, window_params = [{transform_indices = @transform_0, window_bounds = array<i64: 1, 8, 128>}, {pipeline_mode = #tpu.pipeline_mode<synchronous>, transform_indices = @transform_1, window_bounds = array<i64: 2, 128>}, {pipeline_mode = #tpu.pipeline_mode<synchronous>, transform_indices = @transform_2, window_bounds = array<i64: 2, 128>}, {transform_indices = @transform_3, window_bounds = array<i64: 1, 8, 128>}]} {
    %c0 = arith.constant 0 : index
    %c0_0 = arith.constant 0 : index
    %c0_1 = arith.constant 0 : index
    %0 = vector.load %arg2[%c0, %c0_0, %c0_1] : memref<1x8x128xf32, #tpu.memory_space<vmem>>, vector<1x8x128xf32>
    %1 = vector.shape_cast %0 : vector<1x8x128xf32> to vector<8x128xf32>
    %cst = arith.constant dense<0.000000e+00> : vector<8xf32>
    %2 = vector.multi_reduction <add>, %1, %cst [1] : vector<8x128xf32> to vector<8xf32>
    %3 = vector.shape_cast %2 : vector<8xf32> to vector<8x1xf32>
    %4 = arith.mulf %1, %1 : vector<8x128xf32>
    %cst_2 = arith.constant dense<0.000000e+00> : vector<8xf32>
    %5 = vector.multi_reduction <add>, %4, %cst_2 [1] : vector<8x128xf32> to vector<8xf32>
    %6 = vector.shape_cast %5 : vector<8xf32> to vector<8x1xf32>
    %cst_3 = arith.constant 3.125000e-02 : f32
    %7 = vector.broadcast %cst_3 : f32 to vector<8x1xf32>
    %8 = arith.mulf %3, %7 : vector<8x1xf32>
    %cst_4 = arith.constant 3.125000e-02 : f32
    %9 = vector.broadcast %cst_4 : f32 to vector<8x1xf32>
    %10 = arith.mulf %6, %9 : vector<8x1xf32>
    %11 = arith.mulf %8, %8 : vector<8x1xf32>
    %12 = arith.subf %10, %11 : vector<8x1xf32>
    %cst_5 = arith.constant 0.000000e+00 : f32
    %13 = vector.broadcast %cst_5 : f32 to vector<8x1xf32>
    %14 = arith.maximumf %12, %13 : vector<8x1xf32>
    %cst_6 = arith.constant 9.99999974E-6 : f32
    %15 = vector.broadcast %cst_6 : f32 to vector<8x1xf32>
    %16 = arith.addf %14, %15 : vector<8x1xf32>
    %17 = math.rsqrt %16 : vector<8x1xf32>
    %18 = arith.index_cast %arg0 : i32 to index
    %c0_7 = arith.constant 0 : index
    %19 = vector.load %arg3[%18, %c0_7] : memref<2x128xf32, #tpu.memory_space<vmem>>, vector<1x128xf32>
    %20 = arith.index_cast %arg0 : i32 to index
    %c0_8 = arith.constant 0 : index
    %21 = vector.load %arg4[%20, %c0_8] : memref<2x128xf32, #tpu.memory_space<vmem>>, vector<1x128xf32>
    %22 = vector.broadcast %8 : vector<8x1xf32> to vector<8x128xf32>
    %23 = arith.subf %1, %22 : vector<8x128xf32>
    %24 = vector.broadcast %17 : vector<8x1xf32> to vector<8x128xf32>
    %25 = vector.broadcast %19 : vector<1x128xf32> to vector<8x128xf32>
    %26 = arith.mulf %24, %25 : vector<8x128xf32>
    %27 = arith.mulf %23, %26 : vector<8x128xf32>
    %28 = vector.broadcast %21 : vector<1x128xf32> to vector<8x128xf32>
    %29 = arith.addf %27, %28 : vector<8x128xf32>
    %c0_9 = arith.constant 0 : index
    %c0_10 = arith.constant 0 : index
    %c0_11 = arith.constant 0 : index
    %30 = vector.load %arg5[%c0_9, %c0_10, %c0_11] : memref<1x8x128xf32, #tpu.memory_space<vmem>>, vector<1x8x128xf32>
    %31 = vector.shape_cast %30 : vector<1x8x128xf32> to vector<8x128xf32>
    %32 = vector.shape_cast %29 : vector<8x128xf32> to vector<1x8x128xf32>
    tpu.vector_store %arg5[%c0_9, %c0_10, %c0_11], %32 {strides = array<i32>} : memref<1x8x128xf32, #tpu.memory_space<vmem>>, vector<1x8x128xf32>,
    return
  }
  func.func @transform_0(%arg0: i32, %arg1: i32) -> (i32, i32, i32) {
    %c0_i32 = arith.constant 0 : i32
    %c0_i32_0 = arith.constant 0 : i32
    return %arg0, %arg1, %c0_i32 : i32, i32, i32
  }
  func.func @transform_1(%arg0: i32, %arg1: i32) -> (i32, i32) {
    %c0_i32 = arith.constant 0 : i32
    %c0_i32_0 = arith.constant 0 : i32
    %c0_i32_1 = arith.constant 0 : i32
    return %c0_i32, %c0_i32_0 : i32, i32
  }
  func.func @transform_2(%arg0: i32, %arg1: i32) -> (i32, i32) {
    %c0_i32 = arith.constant 0 : i32
    %c0_i32_0 = arith.constant 0 : i32
    %c0_i32_1 = arith.constant 0 : i32
    return %c0_i32, %c0_i32_0 : i32, i32
  }
  func.func @transform_3(%arg0: i32, %arg1: i32) -> (i32, i32, i32) {
    %c0_i32 = arith.constant 0 : i32
    %c0_i32_0 = arith.constant 0 : i32
    return %arg0, %arg1, %c0_i32 : i32, i32, i32
  }
}

</mosaic_0001>

<llo_original>
// kernel: tpu_custom_call.1
$region0: #{tpu_custom_call.1}
  #allocation0 [shape = 'u32[]', space=smem, size = 0x4, offset = 0x4, fixed_abs, tag = 'smem constant byte address 0x4 - core index']
  #allocation1 [shape = 'u32[144,128]{1,0:T(1,128)}', space=vmem, size = 0x12000, scoped, tag = 'internal scratch']
  %s0 = inlined_call_operand.hbm [shape: f32[2,8,128], index: 0, kind: input, shape index: {}]
  %s1 = inlined_call_operand.vmem [shape: f32[2,128], index: 1, kind: input, shape index: {}]
  %s2 = inlined_call_operand.vmem [shape: f32[2,128], index: 2, kind: input, shape index: {}]
  %s3 = inlined_call_operand.hbm [shape: f32[2,8,128], index: 3, kind: output, shape index: {}]
  %s4 = sld [smem:[#allocation0]]
  $region49: #{tpu_custom_call.1} parent=0
    _
  %s6 = ssub.s32 1, %s4
  %s7 = scalar_select 0, %s6, %s4
  $region1: #{tpu_custom_call.1} parent=0
    #allocation2 [shape = 'u8[8192]{0}', space=vmem, size = 0x2000, scoped, tag = 'input window, operand 0']
    #allocation3 [shape = 's32[2]{0}', space=sflag, size = 0x8, scoped, tag = 'scoped memory for tpu_custom_call.1']
    #allocation4 [shape = 's32[2]{0}', space=sflag, size = 0x8, scoped, tag = 'scoped memory for tpu_custom_call.1']
    #allocation5 [shape = 'u8[8192]{0}', space=vmem, size = 0x2000, scoped, tag = 'output window, operand 0']
    %8 = vsyncpa [#allocation3], 0
    %s9 = scalar_lea.sflag [#allocation3], 1
    %10 = vsyncpa %s9, 0
    %11 = vsyncpa [#allocation4], 0
    %s12 = scalar_lea.sflag [#allocation4], 1
    %13 = vsyncpa %s12, 0
    loop: start=0, step=1, limit=4
    $region2: #{tpu_custom_call.1} parent=1 // loop_pre_header
      _
    $region3: #{tpu_custom_call.1} parent=1 // loop_header
      %s15 = sphi 0, %s19
      %p16 = scmp.ge.s32.totalorder %s15, 4
      %s22 = sphi 0, %s34
      %s23 = sphi 0, %s30
      %s24 = sphi 0, %s22
      %s25 = sphi 0, %s23
      %s26 = sphi 0, %s24
      %s27 = sphi 0, %s25
      %s39 = sphi 0, %s41
      %s42 = sphi 0, %s39
      %s43 = sphi 0, %s42
      %s59 = sphi 0, %s43
      %s63 = sphi 0, %s63
      %s65 = sphi 0, %s63
      %s66 = sphi 0, %s65
      %s80 = sphi 0, %s66
      %s84 = sphi 0, %s84
      %s86 = sphi 0, %s84
      %s87 = sphi 0, %s86
      %s101 = sphi 0, %s87
      %s109 = sphi 0, %s111
      %s112 = sphi 0, %s109
      %s113 = sphi 0, %s112
      %s129 = sphi 0, %s113
    $region4: #{tpu_custom_call.1} parent=1 // loop_header_branch
      %18 = sbr.rel (%p16) target = $region8
    $region5: #{tpu_custom_call.1} parent=1 // loop_body
      %s20 = ssub.s32 %s15, 1
      %s21 = ssub.s32 %s15, 2
      %s28 = sadd.s32 1, %s23
      %p29 = scmp.ge.s32.totalorder %s28, 1
      %s30 = scalar_select %p29, 0, %s28
      %s31 = sadd.s32 1, %s22
      %s32 = scalar_select %p29, %s31, %s22
      %p33 = scmp.ge.s32.totalorder %s32, 2
      %s34 = scalar_select %p33, 0, %s32
      %s35 = ssub.s32 %s22, %s34
      %s36 = ssub.s32 %s23, %s30
      %s37 = sor.u32 %s35, %s36
      %p38 = scmp.eq.s32.totalorder %s37, 0
      %s40 = sadd.s32 %s39, 1
      %s41 = scalar_select %p38, %s39, %s40
      %p44 = pneg %p38
      %p45 = scmp.eq.s32.totalorder %s15, 1
      %p46 = por %p44, %p45
      %p47 = scmp.ne.s32.totalorder %s39, %s42
      %p48 = scmp.eq.s32.totalorder %s15, 0
      %p49 = por %p47, %p48
      %p50 = scmp.ne.s32.totalorder %s39, %s42
      %p51 = scmp.eq.s32.totalorder %s20, 1
      %p52 = por %p50, %p51
      %p53 = scmp.ne.s32.totalorder %s42, %s43
      %p54 = scmp.eq.s32.totalorder %s20, 0
      %p55 = por %p53, %p54
      %p56 = scmp.ne.s32.totalorder %s42, %s43
      %p57 = scmp.eq.s32.totalorder %s21, 1
      %p58 = por %p56, %p57
      %p60 = scmp.ne.s32.totalorder %s43, %s59
      %p61 = scmp.eq.s32.totalorder %s21, 0
      %p62 = por %p60, %p61
      %s64 = sadd.s32 %s63, 1
      %p67 = scmp.eq.s32.totalorder %s15, 1
      %p68 = scmp.ne.s32.totalorder %s63, %s65
      %p69 = scmp.eq.s32.totalorder %s15, 0
      %p70 = por %p68, %p69
      %p71 = scmp.ne.s32.totalorder %s63, %s65
      %p72 = scmp.eq.s32.totalorder %s20, 1
      %p73 = por %p71, %p72
      %p74 = scmp.ne.s32.totalorder %s65, %s66
      %p75 = scmp.eq.s32.totalorder %s20, 0
      %p76 = por %p74, %p75
      %p77 = scmp.ne.s32.totalorder %s65, %s66
      %p78 = scmp.eq.s32.totalorder %s21, 1
      %p79 = por %p77, %p78
      %p81 = scmp.ne.s32.totalorder %s66, %s80
      %p82 = scmp.eq.s32.totalorder %s21, 0
      %p83 = por %p81, %p82
      %s85 = sadd.s32 %s84, 1
      %p88 = scmp.eq.s32.totalorder %s15, 1
      %p89 = scmp.ne.s32.totalorder %s84, %s86
      %p90 = scmp.eq.s32.totalorder %s15, 0
      %p91 = por %p89, %p90
      %p92 = scmp.ne.s32.totalorder %s84, %s86
      %p93 = scmp.eq.s32.totalorder %s20, 1
      %p94 = por %p92, %p93
      %p95 = scmp.ne.s32.totalorder %s86, %s87
      %p96 = scmp.eq.s32.totalorder %s20, 0
      %p97 = por %p95, %p96
      %p98 = scmp.ne.s32.totalorder %s86, %s87
      %p99 = scmp.eq.s32.totalorder %s21, 1
      %p100 = por %p98, %p99
      %p102 = scmp.ne.s32.totalorder %s87, %s101
      %p103 = scmp.eq.s32.totalorder %s21, 0
      %p104 = por %p102, %p103
      %s105 = ssub.s32 %s22, %s34
      %s106 = ssub.s32 %s23, %s30
      %s107 = sor.u32 %s105, %s106
      %p108 = scmp.eq.s32.totalorder %s107, 0
      %s110 = sadd.s32 %s109, 1
      %s111 = scalar_select %p108, %s109, %s110
      %p114 = pneg %p108
      %p115 = scmp.eq.s32.totalorder %s15, 1
      %p116 = por %p114, %p115
      %p117 = scmp.ne.s32.totalorder %s109, %s112
      %p118 = scmp.eq.s32.totalorder %s15, 0
      %p119 = por %p117, %p118
      %p120 = scmp.ne.s32.totalorder %s109, %s112
      %p121 = scmp.eq.s32.totalorder %s20, 1
      %p122 = por %p120, %p121
      %p123 = scmp.ne.s32.totalorder %s112, %s113
      %p124 = scmp.eq.s32.totalorder %s20, 0
      %p125 = por %p123, %p124
      %p126 = scmp.ne.s32.totalorder %s112, %s113
      %p127 = scmp.eq.s32.totalorder %s21, 1
      %p128 = por %p126, %p127
      %p130 = scmp.ne.s32.totalorder %s113, %s129
      %p131 = scmp.eq.s32.totalorder %s21, 0
      %p132 = por %p130, %p131
      %p133 = scmp.le.s32.totalorder 1, %s15
      %p134 = scmp.lt.s32.totalorder %s15, 3
      %p135 = pnand %p133, %p134
      %p136 = pneg %p135
      // Predicated region
      $region9: #{tpu_custom_call.1} parent=5 // pred_check
        _
      $region10: #{tpu_custom_call.1} parent=5 // pred_check_branch
        %138 = sbr.rel (%p135) target = $region12
      $region11: #{tpu_custom_call.1} parent=5 // pred_region
        %s139 = ssub.s32 %s15, 1
        // Predicated region
        $region13: #{tpu_custom_call.1} parent=11 // pred_check
          %p140 = pneg %p76
        $region14: #{tpu_custom_call.1} parent=11 // pred_check_branch
          %142 = sbr.rel (%p140) target = $region16
        $region15: #{tpu_custom_call.1} parent=11 // pred_region
          _
        $region16: #{tpu_custom_call.1} parent=11 // pred_fallthru
          _
        // Predicated region
        $region17: #{tpu_custom_call.1} parent=11 // pred_check
          %p143 = pneg %p97
        $region18: #{tpu_custom_call.1} parent=11 // pred_check_branch
          %145 = sbr.rel (%p143) target = $region20
        $region19: #{tpu_custom_call.1} parent=11 // pred_region
          _
        $region20: #{tpu_custom_call.1} parent=11 // pred_fallthru
          _
      $region12: #{tpu_custom_call.1} parent=5 // pred_fallthru
        _
      %p146 = scmp.lt.s32.totalorder %s15, 2
      // Predicated region
      $region21: #{tpu_custom_call.1} parent=5 // pred_check
        %p147 = pneg %p146
      $region22: #{tpu_custom_call.1} parent=5 // pred_check_branch
        %149 = sbr.rel (%p147) target = $region24
      $region23: #{tpu_custom_call.1} parent=5 // pred_region
        // Predicated region
        $region25: #{tpu_custom_call.1} parent=23 // pred_check
          %p150 = pneg %p49
        $region26: #{tpu_custom_call.1} parent=23 // pred_check_branch
          %152 = sbr.rel (%p150) target = $region28
        $region27: #{tpu_custom_call.1} parent=23 // pred_region
          %s153 = sand.u32 %s39, 1
          %s154 = scalar_lea.sflag [#allocation3], %s153
          %s155 = sand.u32 %s39, 1
          %s156 = smul.addr %s155, 8
          %s157 = scalar_lea.vmem [#allocation2], %s156
          %s159 = ssub.s32 128, 128
          %160 = vsyncadd %s154, %s159
          %s161 = sadd.s32 %s23, %s22
          %s162 = smul.addr %s161, 128
          %s163 = scalar_lea.hbm %s0, %s162
          %s165 = sshll.u32 %s157, 4
          %s166 = int_to_ptr.vmem [resolvable:$true] %s165
          %168 = dma.hbm_to_vmem [thread:$0]  %s163, 128, %s166, %s154
        $region28: #{tpu_custom_call.1} parent=23 // pred_fallthru
          _
      $region24: #{tpu_custom_call.1} parent=5 // pred_fallthru
        _
      %p169 = scmp.le.s32.totalorder 1, %s15
      %p170 = scmp.lt.s32.totalorder %s15, 3
      %p171 = pnand %p169, %p170
      %p172 = pneg %p171
      // Predicated region
      $region29: #{tpu_custom_call.1} parent=5 // pred_check
        _
      $region30: #{tpu_custom_call.1} parent=5 // pred_check_branch
        %174 = sbr.rel (%p171) target = $region32
      $region31: #{tpu_custom_call.1} parent=5 // pred_region
        %s175 = ssub.s32 %s15, 1
        %s176 = sand.u32 %s42, 1
        %s177 = scalar_lea.sflag [#allocation3], %s176
        %s178 = sand.u32 %s42, 1
        %s179 = smul.addr %s178, 8
        %s180 = scalar_lea.vmem [#allocation2], %s179
        // Predicated region
        $region33: #{tpu_custom_call.1} parent=31 // pred_check
          %p181 = pneg %p55
        $region34: #{tpu_custom_call.1} parent=31 // pred_check_branch
          %183 = sbr.rel (%p181) target = $region36
        $region35: #{tpu_custom_call.1} parent=31 // pred_region
          %184 = dma.done %s177, 128
        $region36: #{tpu_custom_call.1} parent=31 // pred_fallthru
          _
        %s185 = sand.u32 %s42, 1
        %s186 = scalar_lea.sflag [#allocation3], %s185
        %s187 = sand.u32 %s42, 1
        %s188 = smul.addr %s187, 8
        %s189 = scalar_lea.vmem [#allocation2], %s188
        %p190 = pneg %p55
        %p191 = pneg %p52
        %p192 = pneg %p76
        %p193 = pneg %p73
        %p194 = pneg %p97
        %p195 = pneg %p94
        %p196 = pneg %p125
        %p197 = pneg %p122
        %s198 = sand.u32 %s112, 1
        %s199 = scalar_lea.sflag [#allocation4], %s198
        %s200 = sand.u32 %s112, 1
        %s201 = smul.addr %s200, 8
        %s202 = scalar_lea.vmem [#allocation5], %s201
        %v203 = vld [vmem:[%s180] sm:$0xff]
        %204 = vadd.xlane.f32.xlu0 %v203
        %v205 = vpop.xlane.xlu0 %204
        %v206 = vmul.f32 %v203, %v203
        %207 = vadd.xlane.f32.xlu0 %v206
        %v208 = vpop.xlane.xlu0 %207
        %v209 = vmul.f32 %v205, 0.03125
        %v210 = vmul.f32 %v208, 0.03125
        %v211 = vmul.f32 %v209, %v209
        %v212 = vsub.f32 %v210, %v211
        %v213 = vmax.f32 %v212, 0.0
        %v214 = vadd.f32 %v213, 1e-05
        %v215 = vrsqrt.pop %v214
        %s216 = scalar_lea.vmem %s1, %s24
        %v217 = vld [vmem:[%s216] sm:$0x1]
        %s218 = scalar_lea.vmem %s2, %s24
        %v219 = vld [vmem:[%s218] sm:$0x1]
        %v220 = vsub.f32 %v203, %v209
        %v221 = vlaneseq
        %v222 = vshrl.u32 %v221, 7
        %v223 = vsub.s32 0, %v222
        %v224 = vrot.slane %v217, %v223
        %v225 = vmul.f32 %v215, %v224
        %v226 = vmul.f32 %v220, %v225
        %v227 = vlaneseq
        %v228 = vshrl.u32 %v227, 7
        %v229 = vsub.s32 0, %v228
        %v230 = vrot.slane %v219, %v229
        %v231 = vadd.f32 %v226, %v230
        %232 = vst [vmem:[%s202] sm:$0xff] %v231
        %s233 = sand.u32 %s112, 1
        %s234 = scalar_lea.sflag [#allocation4], %s233
        %s235 = sand.u32 %s112, 1
        %s236 = smul.addr %s235, 8
        %s237 = scalar_lea.vmem [#allocation5], %s236
        // Predicated region
        $region37: #{tpu_custom_call.1} parent=31 // pred_check
          %p238 = pneg %p122
        $region38: #{tpu_custom_call.1} parent=31 // pred_check_branch
          %240 = sbr.rel (%p238) target = $region40
        $region39: #{tpu_custom_call.1} parent=31 // pred_region
          %s242 = ssub.s32 128, 128
          %243 = vsyncadd %s234, %s242
          %s244 = sadd.s32 %s25, %s24
          %s245 = smul.addr %s244, 128
          %s246 = scalar_lea.hbm %s3, %s245
          %s248 = sshll.u32 %s237, 4
          %s249 = int_to_ptr.vmem [resolvable:$true] %s248
          %251 = dma.vmem_to_hbm [thread:$0]  %s249, 128, %s246, %s234
        $region40: #{tpu_custom_call.1} parent=31 // pred_fallthru
          _
      $region32: #{tpu_custom_call.1} parent=5 // pred_fallthru
        _
      %p252 = scmp.le.s32.totalorder 2, %s15
      // Predicated region
      $region41: #{tpu_custom_call.1} parent=5 // pred_check
        %p253 = pneg %p252
      $region42: #{tpu_custom_call.1} parent=5 // pred_check_branch
        %255 = sbr.rel (%p253) target = $region44
      $region43: #{tpu_custom_call.1} parent=5 // pred_region
        %s256 = ssub.s32 %s15, 2
        // Predicated region
        $region45: #{tpu_custom_call.1} parent=43 // pred_check
          %p257 = pneg %p128
        $region46: #{tpu_custom_call.1} parent=43 // pred_check_branch
          %259 = sbr.rel (%p257) target = $region48
        $region47: #{tpu_custom_call.1} parent=43 // pred_region
          %s260 = sand.u32 %s113, 1
          %s261 = scalar_lea.sflag [#allocation4], %s260
          %s262 = sand.u32 %s113, 1
          %s263 = smul.addr %s262, 8
          %s264 = scalar_lea.vmem [#allocation5], %s263
          %265 = dma.done %s261, 128
        $region48: #{tpu_custom_call.1} parent=43 // pred_fallthru
          _
      $region44: #{tpu_custom_call.1} parent=5 // pred_fallthru
        _
    $region6: #{tpu_custom_call.1} parent=1 // loop_footer
      %s19 = sadd.s32 1, %s15
    $region7: #{tpu_custom_call.1} parent=1 // loop_footer_branch
      %14 = sbr.rel target = $region3
    $region8: #{tpu_custom_call.1} parent=1 // loop_exit
      _
    %266 = vsyncpa [#allocation3], 1
    %s267 = scalar_lea.sflag [#allocation3], 1
    %268 = vsyncpa %s267, 1
    %269 = vsyncpa [#allocation4], 1
    %s270 = scalar_lea.sflag [#allocation4], 1
    %271 = vsyncpa %s270, 1

</llo_original>
